<compile_context>
chip_gen: v6e
topology: v6e:2x2x1
jax: 0.10.0
libtpu: 0.0.40
codegen_flags: <defaults>
</compile_context>

<pallas_src>
import functools

import numpy as np
import jax
import jax.numpy as jnp
from jax.experimental import pallas as pl
from jax.experimental.pallas import tpu as pltpu


# ---------------------------------------------------------------------------
# Parameter construction (deterministic numpy "glue", runs once at init)
# ---------------------------------------------------------------------------
def make1DGaussian(size, fwhm=3, center=None):
    x = np.arange(0, size, 1, dtype=float)
    if center is None:
        center = size // 2
    return np.exp(-4 * np.log(2) * (x - center) ** 2 / fwhm ** 2)


def _round_up(x, m):
    return ((x + m - 1) // m) * m


def _valid_conv_matrix(filt, in_len):
    """Toeplitz matrix so that (x @ M) == conv1d(x, filt, padding='valid')."""
    k = filt.shape[0]
    out_len = in_len - k + 1
    m = np.zeros((in_len, out_len), dtype=np.float64)
    for j in range(out_len):
        m[j:j + k, j] = filt
    return m


def _pad_gather_matrix(in_len, pad, mode):
    """One-hot matrix so that (x @ M) == np.pad(x, pad, mode=mode)."""
    idx = np.pad(np.arange(in_len), pad, mode=mode)
    m = np.zeros((in_len, in_len + 2 * pad), dtype=np.float64)
    m[idx, np.arange(in_len + 2 * pad)] = 1.0
    return m


def _linear_interp_matrix(in_len, out_len):
    """1D linear interpolation matrix, align_corners=True semantics."""
    m = np.zeros((in_len, out_len), dtype=np.float64)
    if out_len == 1:
        m[0, 0] = 1.0
        return m
    for o in range(out_len):
        src = o * (in_len - 1) / (out_len - 1)
        i0 = int(np.floor(src))
        i1 = min(i0 + 1, in_len - 1)
        w1 = src - i0
        m[i0, o] += 1.0 - w1
        m[i1, o] += w1
    return m


# ---------------------------------------------------------------------------
# Pallas kernel: one conv matmul -> normalize -> one interp matmul
# ---------------------------------------------------------------------------
def _grid_kernel(lhs_ref, conv_ref, interp_ref, out_ref, *, half, wg, hg, gx):
    # lhs:    (TB, K)       bf16  [x_rowsum | 0pad | y_colsum | 0pad]
    # conv:   (K, 2*half)   bf16  block-diag [ w_x | w_y | wo_x | wo_y ]
    # interp: (half, M)     f32   block-diag [ interp_x | interp_y ]
    cx = jnp.dot(lhs_ref[...], conv_ref[...],
                 preferred_element_type=jnp.float32)            # (TB, 2*half)
    w_all = cx[:, :half]                     # 128-aligned slice -> free view
    wo_all = cx[:, half:]

    # Exact division (approx reciprocal could inf/NaN when a weight is ~0).
    grid_all = jnp.clip(wo_all / w_all * 2.0 - 1.0, -1.0, 1.0)   # (TB, half)

    # Lanes >= wg in the x block and >= hg in the y block are 0/0 garbage.
    # Their interp rows are zero, but NaN*0 = NaN, so select them away.
    lane = jax.lax.broadcasted_iota(jnp.int32, grid_all.shape, 1)
    valid = (lane < wg) | ((lane >= gx) & (lane < gx + hg))
    grid_all = jnp.where(valid, grid_all, 0.0)

    out_ref[...] = jnp.dot(grid_all, interp_ref[...],
                           preferred_element_type=jnp.float32)   # (TB, M)


# ---------------------------------------------------------------------------
# Module wrapper
# ---------------------------------------------------------------------------
class CuboidGlobalKDEGridPallas:
    def __init__(self, input_shape=(48, 64), output_shape=(64, 128),
                 grid_shape=(31, 51), separable=True, attraction_fwhm=13,
                 anti_crop=True, batch_block=256):
        assert separable, "only the separable (default) path is implemented"
        self.input_shape = input_shape
        self.output_shape = output_shape
        self.grid_shape = grid_shape
        self.attraction_fwhm = attraction_fwhm
        self.anti_crop = anti_crop
        self.padding_size = min(grid_shape) - 1
        self.total_shape = tuple(d + 2 * self.padding_size for d in grid_shape)
        # batch block: 256 rows keeps the per-step footprint well inside the
        # 32 MiB scoped-VMEM default even on v7x (64 MiB physical per TC).
        self.batch_block = batch_block

        Hin, Win = input_shape
        Hg, Wg = grid_shape
        Ho, Wo = output_shape
        Ht, Wt = self.total_shape
        p = self.padding_size
        np_pad_mode = 'reflect' if anti_crop else 'edge'   # torch reflect / replicate

        # --- lane-aligned layout constants --------------------------------
        self.KX, self.KY = _round_up(Win, 128), _round_up(Hin, 128)
        self.K = self.KX + self.KY
        self.GX, self.GY = _round_up(Wg, 128), _round_up(Hg, 128)
        self.G = self.GX + self.GY
        self.MX, self.MY = _round_up(Wo, 128), _round_up(Ho, 128)
        self.M = self.MX + self.MY

        # --- fold padding + P_basis into valid-conv Toeplitz matrices -----
        filt = make1DGaussian(2 * p + 1, fwhm=attraction_fwhm)
        pad_x = _pad_gather_matrix(Wg, p, np_pad_mode)              # (Wg, Wt)
        pad_y = _pad_gather_matrix(Hg, p, np_pad_mode)              # (Hg, Ht)
        conv_x = _valid_conv_matrix(filt, Wt)                       # (Wt, Wg)
        conv_y = _valid_conv_matrix(filt, Ht)                       # (Ht, Hg)
        P_x = (np.arange(Wt) - p) / (Wg - 1.0)
        P_y = (np.arange(Ht) - p) / (Hg - 1.0)
        Ax = pad_x @ conv_x                                         # weights
        Bx = (pad_x * P_x[None, :]) @ conv_x                        # weighted offs
        Ay = pad_y @ conv_y
        By = (pad_y * P_y[None, :]) @ conv_y

        # --- fold nearest-resize (Hin,Win)->(Hg,Wg) + H/W sums ------------
        # x_sal[n,ow] = sum_oh sal[n, hi(oh), wi(ow)]  (linear in sal)
        hi = np.floor(np.arange(Hg) * (Hin / Hg)).astype(np.int64)
        wi = np.floor(np.arange(Wg) * (Win / Wg)).astype(np.int64)
        row_counts = np.bincount(hi, minlength=Hin).astype(np.float64)  # (Hin,)
        col_counts = np.bincount(wi, minlength=Win).astype(np.float64)  # (Win,)
        R_x = np.zeros((Win, Wg)); R_x[wi, np.arange(Wg)] = 1.0
        R_y = np.zeros((Hin, Hg)); R_y[hi, np.arange(Hg)] = 1.0
        Ax_full, Bx_full = R_x @ Ax, R_x @ Bx                       # (Win, Wg)
        Ay_full, By_full = R_y @ Ay, R_y @ By                       # (Hin, Hg)
        self.row_counts = jnp.asarray(row_counts, dtype=jnp.float32)
        self.col_counts = jnp.asarray(col_counts, dtype=jnp.float32)

        # --- block-diagonal conv RHS, every block 128-lane aligned --------
        conv_rhs = np.zeros((self.K, 2 * self.G), dtype=np.float64)
        conv_rhs[0:Win, 0:Wg] = Ax_full                              # w_x
        conv_rhs[self.KX:self.KX + Hin, self.GX:self.GX + Hg] = Ay_full  # w_y
        conv_rhs[0:Win, self.G:self.G + Wg] = Bx_full                # wo_x
        conv_rhs[self.KX:self.KX + Hin,
                 self.G + self.GX:self.G + self.GX + Hg] = By_full   # wo_y
        # bf16: normalization (wo/w) is scale-invariant; halves constant bytes.
        self.conv_rhs = jnp.asarray(conv_rhs, dtype=jnp.bfloat16)

        # --- block-diagonal interpolation RHS, lane-dense 128-padded out --
        interp_x = _linear_interp_matrix(Wg, Wo)                    # (Wg, Wo)
        interp_y = _linear_interp_matrix(Hg, Ho)                    # (Hg, Ho)
        interp = np.zeros((self.G, self.M), dtype=np.float64)
        interp[0:Wg, 0:Wo] = interp_x
        interp[self.GX:self.GX + Hg, self.MX:self.MX + Ho] = interp_y
        # kept f32: grid coordinates feed grid_sample downstream.
        self.interp_rhs = jnp.asarray(interp, dtype=jnp.float32)

        self._jit_forward = jax.jit(self._forward_impl)
        self._jit_profiles = jax.jit(self._profiles_impl)

    # -- saliency ----------------------------------------------------------
    def _saliency(self, imgs, v_pts):
        # TODO(synk): CuboidLayerGlobal source was not provided; substitute a
        # deterministic vanishing-point-centred Gaussian saliency with the
        # same (N, H, W) semantics so the grid-generation pipeline is exact.
        N = imgs.shape[0]
        H, W = self.input_shape
        v = jnp.reshape(v_pts.astype(jnp.float32), (-1, 2))
        v = jnp.broadcast_to(v, (N, 2)) if v.shape[0] == 1 else v[:N]
        vx = v[:, 0][:, None, None]
        vy = v[:, 1][:, None, None]
        ys = jnp.arange(H, dtype=jnp.float32)[None, :, None]
        xs = jnp.arange(W, dtype=jnp.float32)[None, None, :]
        sigma = 0.25 * float(max(H, W))
        return jnp.exp(-((xs - vx) ** 2 + (ys - vy) ** 2) / (2.0 * sigma ** 2))

    # -- profiles (the actual Pallas work) ----------------------------------
    def _profiles_impl(self, imgs, v_pts):
        Hin, Win = self.input_shape
        Hg, Wg = self.grid_shape
        Ho, Wo = self.output_shape
        N = imgs.shape[0]

        sal = self._saliency(imgs, v_pts)                        # (N, Hin, Win)
        # nearest-resize + sums are linear; only the weighted row/col sums are
        # computed here, the gather is folded into conv_rhs.
        xs_raw = jnp.einsum('h,nhw->nw', self.row_counts, sal)   # (N, Win)
        ys_raw = jnp.einsum('w,nhw->nh', self.col_counts, sal)   # (N, Hin)

        lhs = jnp.concatenate(
            [jnp.pad(xs_raw, ((0, 0), (0, self.KX - Win))),
             jnp.pad(ys_raw, ((0, 0), (0, self.KY - Hin)))],
            axis=1).astype(jnp.bfloat16)                         # (N, K)

        TB = min(self.batch_block, N)
        Np = ((N + TB - 1) // TB) * TB
        if Np != N:
            lhs = jnp.pad(lhs, ((0, Np - N), (0, 0)))

        K, G, M = self.K, self.G, self.M
        cost = pl.CostEstimate(
            flops=2 * Np * (K * 2 * G + G * M),
            transcendentals=0,
            bytes_accessed=Np * (K * 2 + M * 4) + K * 2 * G * 2 + G * M * 4)

        out = pl.pallas_call(
            functools.partial(_grid_kernel, half=G, wg=Wg, hg=Hg, gx=self.GX),
            out_shape=jax.ShapeDtypeStruct((Np, M), jnp.float32),
            grid=(Np // TB,),
            in_specs=[
                pl.BlockSpec((TB, K), lambda i: (i, 0)),
                pl.BlockSpec((K, 2 * G), lambda i: (0, 0)),   # resident const
                pl.BlockSpec((G, M), lambda i: (0, 0)),       # resident const
            ],
            out_specs=pl.BlockSpec((TB, M), lambda i: (i, 0)),
            compiler_params=pltpu.CompilerParams(
                dimension_semantics=("parallel",)),           # 2-TC v7x
            cost_estimate=cost,
        )(lhs, self.conv_rhs, self.interp_rhs)

        x_up = out[:N, :Wo]                                      # (N, Wo)
        y_up = out[:N, self.MX:self.MX + Ho]                     # (N, Ho)
        return x_up, y_up

    # -- forward (module semantics: (N, Ho, Wo, 2) sampling grid) -----------
    def _forward_impl(self, imgs, v_pts):
        Ho, Wo = self.output_shape
        N = imgs.shape[0]
        x_up, y_up = self._profiles_impl(imgs, v_pts)
        # equivalent to torch.cat((xgrid, ygrid), 1).permute(0, 2, 3, 1)
        grid_x = jnp.broadcast_to(x_up[:, None, :], (N, Ho, Wo))
        grid_y = jnp.broadcast_to(y_up[:, :, None], (N, Ho, Wo))
        return jnp.stack([grid_x, grid_y], axis=-1)              # (N, Ho, Wo, 2)

    def forward(self, imgs, v_pts):
        return self._jit_forward(imgs, v_pts)

    def forward_profiles(self, imgs, v_pts):
        # Cheap alternative output for consumers that can take the separable
        # 1-D profiles directly (the full grid is ~100x more HBM traffic).
        return self._jit_profiles(imgs, v_pts)


# ---------------------------------------------------------------------------
# Pure-numpy reference of the original torch separable path (for validation)
# ---------------------------------------------------------------------------
def _reference_grid(gen, sal):
    Hg, Wg = gen.grid_shape
    Ho, Wo = gen.output_shape
    Hin, Win = gen.input_shape
    p = gen.padding_size
    N = sal.shape[0]
    mode = 'reflect' if gen.anti_crop else 'edge'
    filt = make1DGaussian(2 * p + 1, fwhm=gen.attraction_fwhm)

    hi = np.floor(np.arange(Hg) * (Hin / Hg)).astype(int)
    wi = np.floor(np.arange(Wg) * (Win / Wg)).astype(int)
    s = sal[:, hi][:, :, wi]                                     # nearest resize
    x_sal, y_sal = s.sum(1), s.sum(2)                            # (N,Wg),(N,Hg)

    def conv_valid(x, f):
        k = f.shape[0]
        return np.stack([(x[:, j:j + k] * f).sum(-1)
                         for j in range(x.shape[1] - k + 1)], axis=1)

    P_x = (np.arange(Wg + 2 * p) - p) / (Wg - 1.0)
    P_y = (np.arange(Hg + 2 * p) - p) / (Hg - 1.0)
    xpad = np.pad(x_sal, ((0, 0), (p, p)), mode=mode)
    ypad = np.pad(y_sal, ((0, 0), (p, p)), mode=mode)
    xg = np.clip(conv_valid(xpad * P_x, filt) / conv_valid(xpad, filt) * 2 - 1, -1, 1)
    yg = np.clip(conv_valid(ypad * P_y, filt) / conv_valid(ypad, filt) * 2 - 1, -1, 1)

    def lin(v, out_len):   # align_corners=True 1D linear interp
        L = v.shape[1]
        src = np.arange(out_len) * (L - 1) / (out_len - 1)
        i0 = np.floor(src).astype(int)
        i1 = np.minimum(i0 + 1, L - 1)
        w = src - i0
        return v[:, i0] * (1 - w) + v[:, i1] * w

    gx, gy = lin(xg, Wo), lin(yg, Ho)
    return np.stack([np.broadcast_to(gx[:, None, :], (N, Ho, Wo)),
                     np.broadcast_to(gy[:, :, None], (N, Ho, Wo))], axis=-1)


if __name__ == "__main__":
    key = jax.random.PRNGKey(0)
    imgs = jax.random.normal(key, (2, 3, 48, 64), dtype=jnp.float32)   # NCHW
    v_pts = jnp.array([[32.0, 12.0], [20.0, 30.0]], dtype=jnp.float32)  # per-image (x, y)

    gen = CuboidGlobalKDEGridPallas(input_shape=(48, 64), output_shape=(64, 128))
    grid = gen.forward(imgs, v_pts)
    grid = jax.block_until_ready(grid)

    assert grid.shape == (2, 64, 128, 2), grid.shape
    assert bool(jnp.all(jnp.isfinite(grid)))
    assert bool(jnp.all(grid >= -1.0 - 1e-5)) and bool(jnp.all(grid <= 1.0 + 1e-5))

    # validate against a pure-numpy reference of the original torch math
    sal_np = np.asarray(gen._saliency(imgs, v_pts), dtype=np.float64)
    ref = _reference_grid(gen, sal_np)
    np.testing.assert_allclose(np.asarray(grid), ref, atol=3e-2)  # bf16 conv stage

    print("KERNEL_OK")
</pallas_src>

<mosaic_0001>
module attributes {stable_mosaic.version = 11 : i64} {
  func.func @_grid_kernel(%arg0: i32, %arg1: memref<2x256xbf16, #tpu.memory_space<vmem>>, %arg2: memref<256x512xbf16, #tpu.memory_space<vmem>>, %arg3: memref<256x256xf32, #tpu.memory_space<vmem>>, %arg4: memref<2x256xf32, #tpu.memory_space<vmem>>) attributes {dimension_semantics = [#tpu.dimension_semantics<parallel>], iteration_bounds = array<i64: 1>, scalar_prefetch = 0 : i64, scratch_operands = 0 : i64, tpu.core_type = #tpu.core_type<tc>, window_params = [{transform_indices = @transform_0, window_bounds = array<i64: 2, 256>}, {pipeline_mode = #tpu.pipeline_mode<synchronous>, transform_indices = @transform_1, window_bounds = array<i64: 256, 512>}, {pipeline_mode = #tpu.pipeline_mode<synchronous>, transform_indices = @transform_2, window_bounds = array<i64: 256, 256>}, {transform_indices = @transform_3, window_bounds = array<i64: 2, 256>}]} {
    %c0 = arith.constant 0 : index
    %c0_0 = arith.constant 0 : index
    %0 = vector.load %arg1[%c0, %c0_0] : memref<2x256xbf16, #tpu.memory_space<vmem>>, vector<2x256xbf16>
    %c0_1 = arith.constant 0 : index
    %c0_2 = arith.constant 0 : index
    %1 = vector.load %arg2[%c0_1, %c0_2] : memref<256x512xbf16, #tpu.memory_space<vmem>>, vector<256x512xbf16>
    %cst = arith.constant dense<0.000000e+00> : vector<2x512xf32>
    %2 = tpu.matmul %0, %1, %cst {dimension_numbers = #tpu.dot_dimension_numbers<[1], [0], [0], [1], [0, 0, 1, 1], [], []>} : vector<2x256xbf16>, vector<256x512xbf16>, vector<2x512xf32> -> vector<2x512xf32>
    %3 = vector.extract_strided_slice %2 {offsets = [0, 0], sizes = [2, 256], strides = [1, 1]} : vector<2x512xf32> to vector<2x256xf32>
    %4 = vector.extract_strided_slice %2 {offsets = [0, 256], sizes = [2, 256], strides = [1, 1]} : vector<2x512xf32> to vector<2x256xf32>
    %5 = arith.divf %4, %3 : vector<2x256xf32>
    %cst_3 = arith.constant 2.000000e+00 : f32
    %6 = vector.broadcast %cst_3 : f32 to vector<2x256xf32>
    %7 = arith.mulf %5, %6 : vector<2x256xf32>
    %cst_4 = arith.constant 1.000000e+00 : f32
    %8 = vector.broadcast %cst_4 : f32 to vector<2x256xf32>
    %9 = arith.subf %7, %8 : vector<2x256xf32>
    %cst_5 = arith.constant -1.000000e+00 : f32
    %cst_6 = arith.constant 1.000000e+00 : f32
    %10 = vector.broadcast %cst_5 : f32 to vector<2x256xf32>
    %11 = arith.maximumf %10, %9 : vector<2x256xf32>
    %12 = vector.broadcast %cst_6 : f32 to vector<2x256xf32>
    %13 = arith.minimumf %12, %11 : vector<2x256xf32>
    %14 = tpu.iota {dimensions = array<i32: 1>} : vector<2x256xi32>
    %c51_i32 = arith.constant 51 : i32
    %15 = vector.broadcast %c51_i32 : i32 to vector<2x256xi32>
    %16 = arith.cmpi slt, %14, %15 : vector<2x256xi32>
    %c128_i32 = arith.constant 128 : i32
    %17 = vector.broadcast %c128_i32 : i32 to vector<2x256xi32>
    %18 = arith.cmpi sge, %14, %17 : vector<2x256xi32>
    %c159_i32 = arith.constant 159 : i32
    %19 = vector.broadcast %c159_i32 : i32 to vector<2x256xi32>
    %20 = arith.cmpi slt, %14, %19 : vector<2x256xi32>
    %21 = arith.andi %18, %20 : vector<2x256xi1>
    %22 = arith.ori %16, %21 : vector<2x256xi1>
    %cst_7 = arith.constant 0.000000e+00 : f32
    %23 = vector.broadcast %cst_7 : f32 to vector<2x256xf32>
    %24 = arith.select %22, %13, %23 : vector<2x256xi1>, vector<2x256xf32>
    %c0_8 = arith.constant 0 : index
    %c0_9 = arith.constant 0 : index
    %25 = vector.load %arg3[%c0_8, %c0_9] : memref<256x256xf32, #tpu.memory_space<vmem>>, vector<256x256xf32>
    %cst_10 = arith.constant dense<0.000000e+00> : vector<2x256xf32>
    %26 = tpu.matmul %24, %25, %cst_10 {dimension_numbers = #tpu.dot_dimension_numbers<[1], [0], [0], [1], [0, 0, 1, 1], [], []>} : vector<2x256xf32>, vector<256x256xf32>, vector<2x256xf32> -> vector<2x256xf32>
    %c0_11 = arith.constant 0 : index
    %c0_12 = arith.constant 0 : index
    %27 = vector.load %arg4[%c0_11, %c0_12] : memref<2x256xf32, #tpu.memory_space<vmem>>, vector<2x256xf32>
    tpu.vector_store %arg4[%c0_11, %c0_12], %26 {strides = array<i32>} : memref<2x256xf32, #tpu.memory_space<vmem>>, vector<2x256xf32>,
    return
  }
  func.func @transform_0(%arg0: i32) -> (i32, i32) {
    %c0_i32 = arith.constant 0 : i32
    %c0_i32_0 = arith.constant 0 : i32
    return %arg0, %c0_i32 : i32, i32
  }
  func.func @transform_1(%arg0: i32) -> (i32, i32) {
    %c0_i32 = arith.constant 0 : i32
    %c0_i32_0 = arith.constant 0 : i32
    %c0_i32_1 = arith.constant 0 : i32
    return %c0_i32, %c0_i32_0 : i32, i32
  }
  func.func @transform_2(%arg0: i32) -> (i32, i32) {
    %c0_i32 = arith.constant 0 : i32
    %c0_i32_0 = arith.constant 0 : i32
    %c0_i32_1 = arith.constant 0 : i32
    return %c0_i32, %c0_i32_0 : i32, i32
  }
  func.func @transform_3(%arg0: i32) -> (i32, i32) {
    %c0_i32 = arith.constant 0 : i32
    %c0_i32_0 = arith.constant 0 : i32
    return %arg0, %c0_i32 : i32, i32
  }
}

</mosaic_0001>

<llo_original>
// kernel: _forward_impl.1
$region0: #{_forward_impl.1}
  #allocation0 [shape = 'u32[]', space=smem, size = 0x4, offset = 0x4, fixed_abs, tag = 'smem constant byte address 0x4 - core index']
  #allocation1 [shape = 'u32[144,128]{1,0:T(1,128)}', space=vmem, size = 0x12000, scoped, tag = 'internal scratch']
  %s0 = inlined_call_operand.vmem [shape: bf16[2,256], index: 0, kind: input, shape index: {}]
  %s1 = inlined_call_operand.hbm [shape: bf16[256,512], index: 1, kind: input, shape index: {}]
  %s2 = inlined_call_operand.hbm [shape: f32[256,256], index: 2, kind: input, shape index: {}]
  %s3 = inlined_call_operand.vmem [shape: f32[2,256], index: 3, kind: output, shape index: {}]
  %s4 = sld [smem:[#allocation0]]
  $region30: #{_forward_impl.1} parent=0
    _
  %s6 = ssub.s32 1, %s4
  %s7 = scalar_select 0, %s6, %s4
  $region1: #{_forward_impl.1} parent=0
    #allocation2 [shape = 'u8[262144]{0}', space=vmem, size = 0x40000, scoped, tag = 'input window, operand 1, single buffered']
    #allocation3 [shape = 's32[1]{0}', space=sflag, size = 0x4, scoped, tag = 'scoped memory for _forward_impl.1']
    #allocation4 [shape = 'u8[262144]{0}', space=vmem, size = 0x40000, scoped, tag = 'input window, operand 2, single buffered']
    #allocation5 [shape = 's32[1]{0}', space=sflag, size = 0x4, scoped, tag = 'scoped memory for _forward_impl.1']
    %8 = vsyncpa [#allocation3], 0
    %9 = vsyncpa [#allocation5], 0
    // Predicated region
    $region2: #{_forward_impl.1} parent=1 // pred_check
      _
    $region3: #{_forward_impl.1} parent=1 // pred_check_branch
      %11 = sbr.rel (0) target = $region5
    $region4: #{_forward_impl.1} parent=1 // pred_region
      _
    $region5: #{_forward_impl.1} parent=1 // pred_fallthru
      _
    // Predicated region
    $region6: #{_forward_impl.1} parent=1 // pred_check
      _
    $region7: #{_forward_impl.1} parent=1 // pred_check_branch
      %13 = sbr.rel (0) target = $region9
    $region8: #{_forward_impl.1} parent=1 // pred_region
      %s15 = ssub.s32 8192, 8192
      %16 = vsyncadd [#allocation3], %s15
      %s17 = sshll.u32 [#allocation2], 4
      %s18 = int_to_ptr.vmem [resolvable:$true] %s17
      %23 = dma.hbm_to_vmem [thread:$0]  %s1, 8192, %s18, [#allocation3], 256, 256, 16
    $region9: #{_forward_impl.1} parent=1 // pred_fallthru
      _
    // Predicated region
    $region10: #{_forward_impl.1} parent=1 // pred_check
      _
    $region11: #{_forward_impl.1} parent=1 // pred_check_branch
      %25 = sbr.rel (0) target = $region13
    $region12: #{_forward_impl.1} parent=1 // pred_region
      %s27 = ssub.s32 8192, 8192
      %28 = vsyncadd [#allocation5], %s27
      %s29 = sshll.u32 [#allocation4], 4
      %s30 = int_to_ptr.vmem [resolvable:$true] %s29
      %35 = dma.hbm_to_vmem [thread:$0]  %s2, 8192, %s30, [#allocation5], 256, 256, 16
    $region13: #{_forward_impl.1} parent=1 // pred_fallthru
      _
    // Predicated region
    $region14: #{_forward_impl.1} parent=1 // pred_check
      _
    $region15: #{_forward_impl.1} parent=1 // pred_check_branch
      %37 = sbr.rel (0) target = $region17
    $region16: #{_forward_impl.1} parent=1 // pred_region
      %38 = dma.done [#allocation3], 8192
    $region17: #{_forward_impl.1} parent=1 // pred_fallthru
      _
    // Predicated region
    $region18: #{_forward_impl.1} parent=1 // pred_check
      _
    $region19: #{_forward_impl.1} parent=1 // pred_check_branch
      %40 = sbr.rel (0) target = $region21
    $region20: #{_forward_impl.1} parent=1 // pred_region
      %41 = dma.done [#allocation5], 8192
    $region21: #{_forward_impl.1} parent=1 // pred_fallthru
      _
    %v42 = vld [vmem:[%s0] sm:$0x3]
    %v43 = vld [vmem:[#allocation2] sm:$0xff]
    %v44 = vld [vmem:[#allocation2 + $0x8] sm:$0xff]
    %v45 = vld [vmem:[#allocation2 + $0x10] sm:$0xff]
    %v46 = vld [vmem:[#allocation2 + $0x18] sm:$0xff]
    %v47 = vld [vmem:[#allocation2 + $0x20] sm:$0xff]
    %v48 = vld [vmem:[#allocation2 + $0x28] sm:$0xff]
    %v49 = vld [vmem:[#allocation2 + $0x30] sm:$0xff]
    %v50 = vld [vmem:[#allocation2 + $0x38] sm:$0xff]
    %v51 = vld [vmem:[#allocation2 + $0x40] sm:$0xff]
    %v52 = vld [vmem:[#allocation2 + $0x48] sm:$0xff]
    %v53 = vld [vmem:[#allocation2 + $0x50] sm:$0xff]
    %v54 = vld [vmem:[#allocation2 + $0x58] sm:$0xff]
    %v55 = vld [vmem:[#allocation2 + $0x60] sm:$0xff]
    %v56 = vld [vmem:[#allocation2 + $0x68] sm:$0xff]
    %v57 = vld [vmem:[#allocation2 + $0x70] sm:$0xff]
    %v58 = vld [vmem:[#allocation2 + $0x78] sm:$0xff]
    %v59 = vld [vmem:[#allocation2 + $0x80] sm:$0xff]
    %v60 = vld [vmem:[#allocation2 + $0x88] sm:$0xff]
    %v61 = vld [vmem:[#allocation2 + $0x90] sm:$0xff]
    %v62 = vld [vmem:[#allocation2 + $0x98] sm:$0xff]
    %v63 = vld [vmem:[#allocation2 + $0xa0] sm:$0xff]
    %v64 = vld [vmem:[#allocation2 + $0xa8] sm:$0xff]
    %v65 = vld [vmem:[#allocation2 + $0xb0] sm:$0xff]
    %v66 = vld [vmem:[#allocation2 + $0xb8] sm:$0xff]
    %v67 = vld [vmem:[#allocation2 + $0xc0] sm:$0xff]
    %v68 = vld [vmem:[#allocation2 + $0xc8] sm:$0xff]
    %v69 = vld [vmem:[#allocation2 + $0xd0] sm:$0xff]
    %v70 = vld [vmem:[#allocation2 + $0xd8] sm:$0xff]
    %v71 = vld [vmem:[#allocation2 + $0xe0] sm:$0xff]
    %v72 = vld [vmem:[#allocation2 + $0xe8] sm:$0xff]
    %v73 = vld [vmem:[#allocation2 + $0xf0] sm:$0xff]
    %v74 = vld [vmem:[#allocation2 + $0xf8] sm:$0xff]
    %v75 = vld [vmem:[#allocation2 + $0x100] sm:$0xff]
    %v76 = vld [vmem:[#allocation2 + $0x108] sm:$0xff]
    %v77 = vld [vmem:[#allocation2 + $0x110] sm:$0xff]
    %v78 = vld [vmem:[#allocation2 + $0x118] sm:$0xff]
    %v79 = vld [vmem:[#allocation2 + $0x120] sm:$0xff]
    %v80 = vld [vmem:[#allocation2 + $0x128] sm:$0xff]
    %v81 = vld [vmem:[#allocation2 + $0x130] sm:$0xff]
    %v82 = vld [vmem:[#allocation2 + $0x138] sm:$0xff]
    %v83 = vld [vmem:[#allocation2 + $0x140] sm:$0xff]
    %v84 = vld [vmem:[#allocation2 + $0x148] sm:$0xff]
    %v85 = vld [vmem:[#allocation2 + $0x150] sm:$0xff]
    %v86 = vld [vmem:[#allocation2 + $0x158] sm:$0xff]
    %v87 = vld [vmem:[#allocation2 + $0x160] sm:$0xff]
    %v88 = vld [vmem:[#allocation2 + $0x168] sm:$0xff]
    %v89 = vld [vmem:[#allocation2 + $0x170] sm:$0xff]
    %v90 = vld [vmem:[#allocation2 + $0x178] sm:$0xff]
    %v91 = vld [vmem:[#allocation2 + $0x180] sm:$0xff]
    %v92 = vld [vmem:[#allocation2 + $0x188] sm:$0xff]
    %v93 = vld [vmem:[#allocation2 + $0x190] sm:$0xff]
    %v94 = vld [vmem:[#allocation2 + $0x198] sm:$0xff]
    %v95 = vld [vmem:[#allocation2 + $0x1a0] sm:$0xff]
    %v96 = vld [vmem:[#allocation2 + $0x1a8] sm:$0xff]
    %v97 = vld [vmem:[#allocation2 + $0x1b0] sm:$0xff]
    %v98 = vld [vmem:[#allocation2 + $0x1b8] sm:$0xff]
    %v99 = vld [vmem:[#allocation2 + $0x1c0] sm:$0xff]
    %v100 = vld [vmem:[#allocation2 + $0x1c8] sm:$0xff]
    %v101 = vld [vmem:[#allocation2 + $0x1d0] sm:$0xff]
    %v102 = vld [vmem:[#allocation2 + $0x1d8] sm:$0xff]
    %v103 = vld [vmem:[#allocation2 + $0x1e0] sm:$0xff]
    %v104 = vld [vmem:[#allocation2 + $0x1e8] sm:$0xff]
    %v105 = vld [vmem:[#allocation2 + $0x1f0] sm:$0xff]
    %v106 = vld [vmem:[#allocation2 + $0x1f8] sm:$0xff]
    %v109 = vunpack.c.l.s4 1966171168
    %v110 = vunpack.c.0.s8 %v109
    %v111 = vlaneseq
    %v112 = vshrl.u32 %v111, 7
    %v113 = vsub.s32 %v110, %v112
    %v114 = vrot.slane %v42, %v113
    %v115 = vcombine.high %v114, %v114
    %v117 = vunpack.c.l.s4 1966171168
    %v118 = vunpack.c.0.s8 %v117
    %v119 = vlaneseq
    %v120 = vshrl.u32 %v119, 7
    %v121 = vsub.s32 %v118, %v120
    %v122 = vrot.slane %v114, %v121
    %v124 = vunpack.c.l.s4 1966171168
    %v125 = vunpack.c.0.s8 %v124
    %v126 = vlaneseq
    %v127 = vshrl.u32 %v126, 7
    %v128 = vsub.s32 %v125, %v127
    %v129 = vrot.slane %v115, %v128
    %v196 = vunpack.c.l.b16 %v43
    %v197 = vunpack.c.h.b16 %v43
    %v198 = vunpack.c.l.b16 %v44
    %v199 = vunpack.c.h.b16 %v44
    %v200 = vunpack.c.l.b16 %v45
    %v201 = vunpack.c.h.b16 %v45
    %v202 = vunpack.c.l.b16 %v46
    %v203 = vunpack.c.h.b16 %v46
    %v204 = vunpack.c.l.b16 %v47
    %v205 = vunpack.c.h.b16 %v47
    %v206 = vunpack.c.l.b16 %v48
    %v207 = vunpack.c.h.b16 %v48
    %v208 = vunpack.c.l.b16 %v49
    %v209 = vunpack.c.h.b16 %v49
    %v210 = vunpack.c.l.b16 %v50
    %v211 = vunpack.c.h.b16 %v50
    %v212 = vunpack.c.l.b16 %v51
    %v213 = vunpack.c.h.b16 %v51
    %v214 = vunpack.c.l.b16 %v52
    %v215 = vunpack.c.h.b16 %v52
    %v216 = vunpack.c.l.b16 %v53
    %v217 = vunpack.c.h.b16 %v53
    %v218 = vunpack.c.l.b16 %v54
    %v219 = vunpack.c.h.b16 %v54
    %v220 = vunpack.c.l.b16 %v55
    %v221 = vunpack.c.h.b16 %v55
    %v222 = vunpack.c.l.b16 %v56
    %v223 = vunpack.c.h.b16 %v56
    %v224 = vunpack.c.l.b16 %v57
    %v225 = vunpack.c.h.b16 %v57
    %v226 = vunpack.c.l.b16 %v58
    %v227 = vunpack.c.h.b16 %v58
    %v228 = vunpack.c.l.b16 %v59
    %v229 = vunpack.c.h.b16 %v59
    %v230 = vunpack.c.l.b16 %v60
    %v231 = vunpack.c.h.b16 %v60
    %v232 = vunpack.c.l.b16 %v61
    %v233 = vunpack.c.h.b16 %v61
    %v234 = vunpack.c.l.b16 %v62
    %v235 = vunpack.c.h.b16 %v62
    %v236 = vunpack.c.l.b16 %v63
    %v237 = vunpack.c.h.b16 %v63
    %v238 = vunpack.c.l.b16 %v64
    %v239 = vunpack.c.h.b16 %v64
    %v240 = vunpack.c.l.b16 %v65
    %v241 = vunpack.c.h.b16 %v65
    %v242 = vunpack.c.l.b16 %v66
    %v243 = vunpack.c.h.b16 %v66
    %v244 = vunpack.c.l.b16 %v67
    %v245 = vunpack.c.h.b16 %v67
    %v246 = vunpack.c.l.b16 %v68
    %v247 = vunpack.c.h.b16 %v68
    %v248 = vunpack.c.l.b16 %v69
    %v249 = vunpack.c.h.b16 %v69
    %v250 = vunpack.c.l.b16 %v70
    %v251 = vunpack.c.h.b16 %v70
    %v252 = vunpack.c.l.b16 %v71
    %v253 = vunpack.c.h.b16 %v71
    %v254 = vunpack.c.l.b16 %v72
    %v255 = vunpack.c.h.b16 %v72
    %v256 = vunpack.c.l.b16 %v73
    %v257 = vunpack.c.h.b16 %v73
    %v258 = vunpack.c.l.b16 %v74
    %v259 = vunpack.c.h.b16 %v74
    %v260 = vunpack.c.l.b16 %v75
    %v261 = vunpack.c.h.b16 %v75
    %v262 = vunpack.c.l.b16 %v76
    %v263 = vunpack.c.h.b16 %v76
    %v264 = vunpack.c.l.b16 %v77
    %v265 = vunpack.c.h.b16 %v77
    %v266 = vunpack.c.l.b16 %v78
    %v267 = vunpack.c.h.b16 %v78
    %v268 = vunpack.c.l.b16 %v79
    %v269 = vunpack.c.h.b16 %v79
    %v270 = vunpack.c.l.b16 %v80
    %v271 = vunpack.c.h.b16 %v80
    %v272 = vunpack.c.l.b16 %v81
    %v273 = vunpack.c.h.b16 %v81
    %v274 = vunpack.c.l.b16 %v82
    %v275 = vunpack.c.h.b16 %v82
    %v276 = vunpack.c.l.b16 %v83
    %v277 = vunpack.c.h.b16 %v83
    %v278 = vunpack.c.l.b16 %v84
    %v279 = vunpack.c.h.b16 %v84
    %v280 = vunpack.c.l.b16 %v85
    %v281 = vunpack.c.h.b16 %v85
    %v282 = vunpack.c.l.b16 %v86
    %v283 = vunpack.c.h.b16 %v86
    %v284 = vunpack.c.l.b16 %v87
    %v285 = vunpack.c.h.b16 %v87
    %v286 = vunpack.c.l.b16 %v88
    %v287 = vunpack.c.h.b16 %v88
    %v288 = vunpack.c.l.b16 %v89
    %v289 = vunpack.c.h.b16 %v89
    %v290 = vunpack.c.l.b16 %v90
    %v291 = vunpack.c.h.b16 %v90
    %v292 = vunpack.c.l.b16 %v91
    %v293 = vunpack.c.h.b16 %v91
    %v294 = vunpack.c.l.b16 %v92
    %v295 = vunpack.c.h.b16 %v92
    %v296 = vunpack.c.l.b16 %v93
    %v297 = vunpack.c.h.b16 %v93
    %v298 = vunpack.c.l.b16 %v94
    %v299 = vunpack.c.h.b16 %v94
    %v300 = vunpack.c.l.b16 %v95
    %v301 = vunpack.c.h.b16 %v95
    %v302 = vunpack.c.l.b16 %v96
    %v303 = vunpack.c.h.b16 %v96
    %v304 = vunpack.c.l.b16 %v97
    %v305 = vunpack.c.h.b16 %v97
    %v306 = vunpack.c.l.b16 %v98
    %v307 = vunpack.c.h.b16 %v98
    %v308 = vunpack.c.l.b16 %v99
    %v309 = vunpack.c.h.b16 %v99
    %v310 = vunpack.c.l.b16 %v100
    %v311 = vunpack.c.h.b16 %v100
    %v312 = vunpack.c.l.b16 %v101
    %v313 = vunpack.c.h.b16 %v101
    %v314 = vunpack.c.l.b16 %v102
    %v315 = vunpack.c.h.b16 %v102
    %v316 = vunpack.c.l.b16 %v103
    %v317 = vunpack.c.h.b16 %v103
    %v318 = vunpack.c.l.b16 %v104
    %v319 = vunpack.c.h.b16 %v104
    %v320 = vunpack.c.l.b16 %v105
    %v321 = vunpack.c.h.b16 %v105
    %v322 = vunpack.c.l.b16 %v106
    %v323 = vunpack.c.h.b16 %v106
    %v324 = vpack.c.b16 %v200, %v196
    %v325 = vpack.c.b16 %v201, %v197
    %v326 = vpack.c.b16 %v202, %v198
    %v327 = vpack.c.b16 %v203, %v199
    %v328 = vpack.c.b16 %v208, %v204
    %v329 = vpack.c.b16 %v209, %v205
    %v330 = vpack.c.b16 %v210, %v206
    %v331 = vpack.c.b16 %v211, %v207
    %v332 = vpack.c.b16 %v216, %v212
    %v333 = vpack.c.b16 %v217, %v213
    %v334 = vpack.c.b16 %v218, %v214
    %v335 = vpack.c.b16 %v219, %v215
    %v336 = vpack.c.b16 %v224, %v220
    %v337 = vpack.c.b16 %v225, %v221
    %v338 = vpack.c.b16 %v226, %v222
    %v339 = vpack.c.b16 %v227, %v223
    %v340 = vpack.c.b16 %v232, %v228
    %v341 = vpack.c.b16 %v233, %v229
    %v342 = vpack.c.b16 %v234, %v230
    %v343 = vpack.c.b16 %v235, %v231
    %v344 = vpack.c.b16 %v240, %v236
    %v345 = vpack.c.b16 %v241, %v237
    %v346 = vpack.c.b16 %v242, %v238
    %v347 = vpack.c.b16 %v243, %v239
    %v348 = vpack.c.b16 %v248, %v244
    %v349 = vpack.c.b16 %v249, %v245
    %v350 = vpack.c.b16 %v250, %v246
    %v351 = vpack.c.b16 %v251, %v247
    %v352 = vpack.c.b16 %v256, %v252
    %v353 = vpack.c.b16 %v257, %v253
    %v354 = vpack.c.b16 %v258, %v254
    %v355 = vpack.c.b16 %v259, %v255
    %v356 = vpack.c.b16 %v264, %v260
    %v357 = vpack.c.b16 %v265, %v261
    %v358 = vpack.c.b16 %v266, %v262
    %v359 = vpack.c.b16 %v267, %v263
    %v360 = vpack.c.b16 %v272, %v268
    %v361 = vpack.c.b16 %v273, %v269
    %v362 = vpack.c.b16 %v274, %v270
    %v363 = vpack.c.b16 %v275, %v271
    %v364 = vpack.c.b16 %v280, %v276
    %v365 = vpack.c.b16 %v281, %v277
    %v366 = vpack.c.b16 %v282, %v278
    %v367 = vpack.c.b16 %v283, %v279
    %v368 = vpack.c.b16 %v288, %v284
    %v369 = vpack.c.b16 %v289, %v285
    %v370 = vpack.c.b16 %v290, %v286
    %v371 = vpack.c.b16 %v291, %v287
    %v372 = vpack.c.b16 %v296, %v292
    %v373 = vpack.c.b16 %v297, %v293
    %v374 = vpack.c.b16 %v298, %v294
    %v375 = vpack.c.b16 %v299, %v295
    %v376 = vpack.c.b16 %v304, %v300
    %v377 = vpack.c.b16 %v305, %v301
    %v378 = vpack.c.b16 %v306, %v302
    %v379 = vpack.c.b16 %v307, %v303
    %v380 = vpack.c.b16 %v312, %v308
    %v381 = vpack.c.b16 %v313, %v309
    %v382 = vpack.c.b16 %v314, %v310
    %v383 = vpack.c.b16 %v315, %v311
    %v384 = vpack.c.b16 %v320, %v316
    %v385 = vpack.c.b16 %v321, %v317
    %v386 = vpack.c.b16 %v322, %v318
    %v387 = vpack.c.b16 %v323, %v319
    %452 = vmatprep.subr.bf16.mxu0 %v353
    %453 = vmatpush1.bf16.msra.mxu0 %v352
    %454 = vmatprep.subr.bf16.mxu0 %v349
    %455 = vmatpush1.bf16.msra.mxu0 %v348
    %456 = vmatprep.subr.bf16.mxu0 %v345
    %457 = vmatpush1.bf16.msra.mxu0 %v344
    %458 = vmatprep.subr.bf16.mxu0 %v341
    %459 = vmatpush1.bf16.msra.mxu0 %v340
    %460 = vmatprep.subr.bf16.mxu0 %v337
    %461 = vmatpush1.bf16.msra.mxu0 %v336
    %462 = vmatprep.subr.bf16.mxu0 %v333
    %463 = vmatpush1.bf16.msra.mxu0 %v332
    %464 = vmatprep.subr.bf16.mxu0 %v329
    %465 = vmatpush1.bf16.msra.mxu0 %v328
    %466 = vmatprep.subr.bf16.mxu0 %v325
    %467 = vmatpush1.bf16.msra.mxu0 %v324
    %468 = vmatprep.subr.bf16.mxu0 %v385
    %469 = vmatpush2.bf16.msra.mxu0 %v384
    %470 = vmatprep.subr.bf16.mxu0 %v381
    %471 = vmatpush2.bf16.msra.mxu0 %v380
    %472 = vmatprep.subr.bf16.mxu0 %v377
    %473 = vmatpush2.bf16.msra.mxu0 %v376
    %474 = vmatprep.subr.bf16.mxu0 %v373
    %475 = vmatpush2.bf16.msra.mxu0 %v372
    %476 = vmatprep.subr.bf16.mxu0 %v369
    %477 = vmatpush2.bf16.msra.mxu0 %v368
    %478 = vmatprep.subr.bf16.mxu0 %v365
    %479 = vmatpush2.bf16.msra.mxu0 %v364
    %480 = vmatprep.subr.bf16.mxu0 %v361
    %481 = vmatpush2.bf16.msra.mxu0 %v360
    %482 = vmatprep.subr.bf16.mxu0 %v357
    %483 = vmatpush2.bf16.msra.mxu0 %v356
    %484 = vmatprep.mubr.bf16.mxu0 %v129
    %485 = vmatmul.mubr.bf16.gmra.mxu0 %v122
    %v486 = vpop.f32.mrf.mxu0
    %v487 = vadd.f32 0.0, %v486
    %v488 = vpop.f32.mrf.mxu0
    %v489 = vadd.f32 0.0, %v488
    %v490 = vpop.f32.mrf.mxu0
    %v491 = vpop.f32.mrf.mxu0
    %492 = vdwg.mxu0
    %493 = vmatprep.subr.bf16.mxu0 %v355
    %494 = vmatpush1.bf16.msra.mxu0 %v354
    %495 = vmatprep.subr.bf16.mxu0 %v351
    %496 = vmatpush1.bf16.msra.mxu0 %v350
    %497 = vmatprep.subr.bf16.mxu0 %v347
    %498 = vmatpush1.bf16.msra.mxu0 %v346
    %499 = vmatprep.subr.bf16.mxu0 %v343
    %500 = vmatpush1.bf16.msra.mxu0 %v342
    %501 = vmatprep.subr.bf16.mxu0 %v339
    %502 = vmatpush1.bf16.msra.mxu0 %v338
    %503 = vmatprep.subr.bf16.mxu0 %v335
    %504 = vmatpush1.bf16.msra.mxu0 %v334
    %505 = vmatprep.subr.bf16.mxu0 %v331
    %506 = vmatpush1.bf16.msra.mxu0 %v330
    %507 = vmatprep.subr.bf16.mxu0 %v327
    %508 = vmatpush1.bf16.msra.mxu0 %v326
    %509 = vmatprep.subr.bf16.mxu0 %v387
    %510 = vmatpush2.bf16.msra.mxu0 %v386
    %511 = vmatprep.subr.bf16.mxu0 %v383
    %512 = vmatpush2.bf16.msra.mxu0 %v382
    %513 = vmatprep.subr.bf16.mxu0 %v379
    %514 = vmatpush2.bf16.msra.mxu0 %v378
    %515 = vmatprep.subr.bf16.mxu0 %v375
    %516 = vmatpush2.bf16.msra.mxu0 %v374
    %517 = vmatprep.subr.bf16.mxu0 %v371
    %518 = vmatpush2.bf16.msra.mxu0 %v370
    %519 = vmatprep.subr.bf16.mxu0 %v367
    %520 = vmatpush2.bf16.msra.mxu0 %v366
    %521 = vmatprep.subr.bf16.mxu0 %v363
    %522 = vmatpush2.bf16.msra.mxu0 %v362
    %523 = vmatprep.subr.bf16.mxu0 %v359
    %524 = vmatpush2.bf16.msra.mxu0 %v358
    %525 = vmatprep.mubr.bf16.mxu0 %v129
    %526 = vmatmul.mubr.bf16.gmra.mxu0 %v122
    %v527 = vpop.f32.mrf.mxu0
    %v528 = vadd.f32 0.0, %v527
    %v529 = vpop.f32.mrf.mxu0
    %v530 = vadd.f32 0.0, %v529
    %v531 = vpop.f32.mrf.mxu0
    %v532 = vpop.f32.mrf.mxu0
    %533 = vdwg.mxu0
    %v534 = vrcp.pop %v487
    %v535 = vmul.f32 %v528, %v534
    %v536 = vrcp.pop %v489
    %v537 = vmul.f32 %v530, %v536
    %v538 = vmul.f32 %v535, 2.0
    %v539 = vmul.f32 %v537, 2.0
    %v540 = vsub.f32 %v538, 1.0
    %v541 = vsub.f32 %v539, 1.0
    %v542 = vmax.f32 %v540, -1.0
    %v543 = vmax.f32 %v541, -1.0
    %v544 = vmin.f32 %v542, 1.0
    %v545 = vmin.f32 %v543, 1.0
    %v546 = vlaneseq
    %v547 = vand.u32 %v546, 127
    %v548 = vadd.s32 %v547, 128
    %vm549 = vcmp.lt.s32.totalorder %v547, 51
    %vm550 = vcmp.lt.s32.totalorder %v548, 51
    %vm551 = vcmp.ge.s32.totalorder %v547, 128
    %vm552 = vcmp.ge.s32.totalorder %v548, 128
    %vm553 = vcmp.lt.s32.totalorder %v547, 159
    %vm554 = vcmp.lt.s32.totalorder %v548, 159
    %vm555 = vmand %vm551, %vm553
    %vm556 = vmand %vm552, %vm554
    %vm557 = vmor %vm549, %vm555
    %vm558 = vmor %vm550, %vm556
    %v559 = vsel %vm557, %v544, 0.0
    %v560 = vsel %vm558, %v545, 0.0
    %v561 = vld [vmem:[#allocation4] sm:$0xff]
    %v562 = vld [vmem:[#allocation4 + $0x8] sm:$0xff]
    %v563 = vld [vmem:[#allocation4 + $0x10] sm:$0xff]
    %v564 = vld [vmem:[#allocation4 + $0x18] sm:$0xff]
    %v565 = vld [vmem:[#allocation4 + $0x20] sm:$0xff]
    %v566 = vld [vmem:[#allocation4 + $0x28] sm:$0xff]
    %v567 = vld [vmem:[#allocation4 + $0x30] sm:$0xff]
    %v568 = vld [vmem:[#allocation4 + $0x38] sm:$0xff]
    %v569 = vld [vmem:[#allocation4 + $0x40] sm:$0xff]
    %v570 = vld [vmem:[#allocation4 + $0x48] sm:$0xff]
    %v571 = vld [vmem:[#allocation4 + $0x50] sm:$0xff]
    %v572 = vld [vmem:[#allocation4 + $0x58] sm:$0xff]
    %v573 = vld [vmem:[#allocation4 + $0x60] sm:$0xff]
    %v574 = vld [vmem:[#allocation4 + $0x68] sm:$0xff]
    %v575 = vld [vmem:[#allocation4 + $0x70] sm:$0xff]
    %v576 = vld [vmem:[#allocation4 + $0x78] sm:$0xff]
    %v577 = vld [vmem:[#allocation4 + $0x80] sm:$0xff]
    %v578 = vld [vmem:[#allocation4 + $0x88] sm:$0xff]
    %v579 = vld [vmem:[#allocation4 + $0x90] sm:$0xff]
    %v580 = vld [vmem:[#allocation4 + $0x98] sm:$0xff]
    %v581 = vld [vmem:[#allocation4 + $0xa0] sm:$0xff]
    %v582 = vld [vmem:[#allocation4 + $0xa8] sm:$0xff]
    %v583 = vld [vmem:[#allocation4 + $0xb0] sm:$0xff]
    %v584 = vld [vmem:[#allocation4 + $0xb8] sm:$0xff]
    %v585 = vld [vmem:[#allocation4 + $0xc0] sm:$0xff]
    %v586 = vld [vmem:[#allocation4 + $0xc8] sm:$0xff]
    %v587 = vld [vmem:[#allocation4 + $0xd0] sm:$0xff]
    %v588 = vld [vmem:[#allocation4 + $0xd8] sm:$0xff]
    %v589 = vld [vmem:[#allocation4 + $0xe0] sm:$0xff]
    %v590 = vld [vmem:[#allocation4 + $0xe8] sm:$0xff]
    %v591 = vld [vmem:[#allocation4 + $0xf0] sm:$0xff]
    %v592 = vld [vmem:[#allocation4 + $0xf8] sm:$0xff]
    %v593 = vld [vmem:[#allocation4 + $0x100] sm:$0xff]
    %v594 = vld [vmem:[#allocation4 + $0x108] sm:$0xff]
    %v595 = vld [vmem:[#allocation4 + $0x110] sm:$0xff]
    %v596 = vld [vmem:[#allocation4 + $0x118] sm:$0xff]
    %v597 = vld [vmem:[#allocation4 + $0x120] sm:$0xff]
    %v598 = vld [vmem:[#allocation4 + $0x128] sm:$0xff]
    %v599 = vld [vmem:[#allocation4 + $0x130] sm:$0xff]
    %v600 = vld [vmem:[#allocation4 + $0x138] sm:$0xff]
    %v601 = vld [vmem:[#allocation4 + $0x140] sm:$0xff]
    %v602 = vld [vmem:[#allocation4 + $0x148] sm:$0xff]
    %v603 = vld [vmem:[#allocation4 + $0x150] sm:$0xff]
    %v604 = vld [vmem:[#allocation4 + $0x158] sm:$0xff]
    %v605 = vld [vmem:[#allocation4 + $0x160] sm:$0xff]
    %v606 = vld [vmem:[#allocation4 + $0x168] sm:$0xff]
    %v607 = vld [vmem:[#allocation4 + $0x170] sm:$0xff]
    %v608 = vld [vmem:[#allocation4 + $0x178] sm:$0xff]
    %v609 = vld [vmem:[#allocation4 + $0x180] sm:$0xff]
    %v610 = vld [vmem:[#allocation4 + $0x188] sm:$0xff]
    %v611 = vld [vmem:[#allocation4 + $0x190] sm:$0xff]
    %v612 = vld [vmem:[#allocation4 + $0x198] sm:$0xff]
    %v613 = vld [vmem:[#allocation4 + $0x1a0] sm:$0xff]
    %v614 = vld [vmem:[#allocation4 + $0x1a8] sm:$0xff]
    %v615 = vld [vmem:[#allocation4 + $0x1b0] sm:$0xff]
    %v616 = vld [vmem:[#allocation4 + $0x1b8] sm:$0xff]
    %v617 = vld [vmem:[#allocation4 + $0x1c0] sm:$0xff]
    %v618 = vld [vmem:[#allocation4 + $0x1c8] sm:$0xff]
    %v619 = vld [vmem:[#allocation4 + $0x1d0] sm:$0xff]
    %v620 = vld [vmem:[#allocation4 + $0x1d8] sm:$0xff]
    %v621 = vld [vmem:[#allocation4 + $0x1e0] sm:$0xff]
    %v622 = vld [vmem:[#allocation4 + $0x1e8] sm:$0xff]
    %v623 = vld [vmem:[#allocation4 + $0x1f0] sm:$0xff]
    %v624 = vld [vmem:[#allocation4 + $0x1f8] sm:$0xff]
    %625 = vmatprep.subr.mxu0 %v592
    %626 = vmatpush1.msra.mxu0 %v591
    %627 = vmatprep.subr.mxu0 %v590
    %628 = vmatpush1.msra.mxu0 %v589
    %629 = vmatprep.subr.mxu0 %v588
    %630 = vmatpush1.msra.mxu0 %v587
    %631 = vmatprep.subr.mxu0 %v586
    %632 = vmatpush1.msra.mxu0 %v585
    %633 = vmatprep.subr.mxu0 %v584
    %634 = vmatpush1.msra.mxu0 %v583
    %635 = vmatprep.subr.mxu0 %v582
    %636 = vmatpush1.msra.mxu0 %v581
    %637 = vmatprep.subr.mxu0 %v580
    %638 = vmatpush1.msra.mxu0 %v579
    %639 = vmatprep.subr.mxu0 %v578
    %640 = vmatpush1.msra.mxu0 %v577
    %641 = vmatprep.subr.mxu0 %v576
    %642 = vmatpush1.msra.mxu0 %v575
    %643 = vmatprep.subr.mxu0 %v574
    %644 = vmatpush1.msra.mxu0 %v573
    %645 = vmatprep.subr.mxu0 %v572
    %646 = vmatpush1.msra.mxu0 %v571
    %647 = vmatprep.subr.mxu0 %v570
    %648 = vmatpush1.msra.mxu0 %v569
    %649 = vmatprep.subr.mxu0 %v568
    %650 = vmatpush1.msra.mxu0 %v567
    %651 = vmatprep.subr.mxu0 %v566
    %652 = vmatpush1.msra.mxu0 %v565
    %653 = vmatprep.subr.mxu0 %v564
    %654 = vmatpush1.msra.mxu0 %v563
    %655 = vmatprep.subr.mxu0 %v562
    %656 = vmatpush1.msra.mxu0 %v561
    %657 = vmatprep.subr.mxu0 %v624
    %658 = vmatpush2.msra.mxu0 %v623
    %659 = vmatprep.subr.mxu0 %v622
    %660 = vmatpush2.msra.mxu0 %v621
    %661 = vmatprep.subr.mxu0 %v620
    %662 = vmatpush2.msra.mxu0 %v619
    %663 = vmatprep.subr.mxu0 %v618
    %664 = vmatpush2.msra.mxu0 %v617
    %665 = vmatprep.subr.mxu0 %v616
    %666 = vmatpush2.msra.mxu0 %v615
    %667 = vmatprep.subr.mxu0 %v614
    %668 = vmatpush2.msra.mxu0 %v613
    %669 = vmatprep.subr.mxu0 %v612
    %670 = vmatpush2.msra.mxu0 %v611
    %671 = vmatprep.subr.mxu0 %v610
    %672 = vmatpush2.msra.mxu0 %v609
    %673 = vmatprep.subr.mxu0 %v608
    %674 = vmatpush2.msra.mxu0 %v607
    %675 = vmatprep.subr.mxu0 %v606
    %676 = vmatpush2.msra.mxu0 %v605
    %677 = vmatprep.subr.mxu0 %v604
    %678 = vmatpush2.msra.mxu0 %v603
    %679 = vmatprep.subr.mxu0 %v602
    %680 = vmatpush2.msra.mxu0 %v601
    %681 = vmatprep.subr.mxu0 %v600
    %682 = vmatpush2.msra.mxu0 %v599
    %683 = vmatprep.subr.mxu0 %v598
    %684 = vmatpush2.msra.mxu0 %v597
    %685 = vmatprep.subr.mxu0 %v596
    %686 = vmatpush2.msra.mxu0 %v595
    %687 = vmatprep.subr.mxu0 %v594
    %688 = vmatpush2.msra.mxu0 %v593
    %689 = vmatprep.mubr.f32.mxu0 %v560
    %690 = vmatmul.mubr.f32.gmra.mxu0 %v559
    %v691 = vpop.f32.mrf.mxu0
    %v692 = vadd.f32 0.0, %v691
    %v693 = vpop.f32.mrf.mxu0
    %v694 = vadd.f32 0.0, %v693
    %695 = vdwg.mxu0
    %v698 = vcombine.low %v692, %v694
    %v700 = vunpack.c.l.s4 1983009808
    %v701 = vunpack.c.0.s8 %v700
    %v702 = vlaneseq
    %v703 = vshrl.u32 %v702, 7
    %v704 = vsub.s32 %v701, %v703
    %v705 = vrot.slane %v698, %v704
    %707 = vst [vmem:[%s3] sm:$0xf] %v705
    // Predicated region
    $region22: #{_forward_impl.1} parent=1 // pred_check
      _
    $region23: #{_forward_impl.1} parent=1 // pred_check_branch
      %709 = sbr.rel (0) target = $region25
    $region24: #{_forward_impl.1} parent=1 // pred_region
      _
    $region25: #{_forward_impl.1} parent=1 // pred_fallthru
      _
    // Predicated region
    $region26: #{_forward_impl.1} parent=1 // pred_check
      _
    $region27: #{_forward_impl.1} parent=1 // pred_check_branch
      %711 = sbr.rel (0) target = $region29
    $region28: #{_forward_impl.1} parent=1 // pred_region
      _
    $region29: #{_forward_impl.1} parent=1 // pred_fallthru
      _
    %712 = vsyncpa [#allocation3], 1
    %713 = vsyncpa [#allocation5], 1

</llo_original>
